<compile_context>
chip_gen: v7x
topology: tpu7x:2x2x1
jax: 0.10.0
libtpu: 0.0.40
codegen_flags: <defaults>
</compile_context>

<pallas_src>
import math

import jax
import jax.numpy as jnp
from jax.experimental import pallas as pl
from jax.experimental.pallas import tpu as pltpu

_LANES = 128
_SUBLANES = 8


def _sigmoid_kernel(x_ref, o_ref):
    # Elementwise sigmoid on the whole VMEM-resident slab.
    # jax.nn.sigmoid lowers exp/reciprocal onto the EUP slot (VALU stays free).
    o_ref[...] = jax.nn.sigmoid(x_ref[...])


def _sigmoid_2d(x2d: jax.Array) -> jax.Array:
    rows, lanes = x2d.shape
    dtype = x2d.dtype
    total = rows * lanes
    itemsize = jnp.dtype(dtype).itemsize
    return pl.pallas_call(
        _sigmoid_kernel,
        out_shape=jax.ShapeDtypeStruct((rows, lanes), dtype),
        # Whole-array blocks resident in VMEM: no grid, no pipelining
        # prologue/epilogue, minimal fixed overhead.
        in_specs=[pl.BlockSpec(memory_space=pltpu.MemorySpace.VMEM)],
        out_specs=pl.BlockSpec(memory_space=pltpu.MemorySpace.VMEM),
        # Reuse the input HBM buffer for the output (in-place at the XLA level).
        input_output_aliases={0: 0},
        # Tell XLA this custom call is tiny so it schedules around it freely.
        cost_estimate=pl.CostEstimate(
            flops=2 * total,
            transcendentals=total,
            bytes_accessed=2 * total * itemsize,
        ),
    )(x2d)


def sigmoid_pallas(x_nchw: jax.Array) -> jax.Array:
    """Applies elementwise sigmoid to an NCHW tensor via a Pallas TPU kernel."""
    shape = x_nchw.shape
    total = math.prod(shape)

    if total % _LANES == 0:
        # Fast path (taken for [1, 3840, 1, 1]: 3840 = 30 * 128).
        # Pure metadata reshape to a lane-dense slab; no pad, no post-slice.
        rows = total // _LANES
        x2d = x_nchw.reshape(rows, _LANES)
        out2d = _sigmoid_2d(x2d)
        return out2d.reshape(shape)

    # Generic fallback for element counts not divisible by 128 (never taken
    # for this module): pad to a full vreg tile, compute, slice off the pad.
    tile = _LANES * _SUBLANES
    padded = ((total + tile - 1) // tile) * tile
    flat = jnp.pad(x_nchw.reshape(-1), (0, padded - total))
    out2d = _sigmoid_2d(flat.reshape(padded // _LANES, _LANES))
    return out2d.reshape(-1)[:total].reshape(shape)


if __name__ == "__main__":
    key = jax.random.PRNGKey(0)
    # Input shape implied by the module's forward: [1, 3840, 1, 1] (NCHW).
    x = jax.random.normal(key, (1, 3840, 1, 1), dtype=jnp.float32)

    # Pure-JAX reference (computed first: the pallas output aliases x's buffer).
    y_ref = jax.nn.sigmoid(x)

    y = sigmoid_pallas(x)
    y = jax.block_until_ready(y)

    assert y.shape == (1, 3840, 1, 1)
    assert y.dtype == jnp.float32
    assert jnp.allclose(y, y_ref, atol=1e-6, rtol=1e-6)

    print("KERNEL_OK")
</pallas_src>

<mosaic_0001>
module attributes {stable_mosaic.version = 11 : i64} {
  func.func @_sigmoid_kernel(%arg0: memref<30x128xf32, #tpu.memory_space<vmem>>, %arg1: memref<30x128xf32, #tpu.memory_space<vmem>>) attributes {dimension_semantics = [], scalar_prefetch = 0 : i64, scratch_operands = 0 : i64, tpu.core_type = #tpu.core_type<tc>} {
    %c0 = arith.constant 0 : index
    %c0_0 = arith.constant 0 : index
    %0 = vector.load %arg0[%c0, %c0_0] : memref<30x128xf32, #tpu.memory_space<vmem>>, vector<30x128xf32>
    %1 = arith.negf %0 : vector<30x128xf32>
    %2 = math.exp %1 : vector<30x128xf32>
    %cst = arith.constant 1.000000e+00 : f32
    %3 = vector.broadcast %cst : f32 to vector<30x128xf32>
    %4 = arith.addf %3, %2 : vector<30x128xf32>
    %5 = arith.divf %3, %4 : vector<30x128xf32>
    %c0_1 = arith.constant 0 : index
    %c0_2 = arith.constant 0 : index
    %6 = vector.load %arg1[%c0_1, %c0_2] : memref<30x128xf32, #tpu.memory_space<vmem>>, vector<30x128xf32>
    tpu.vector_store %arg1[%c0_1, %c0_2], %5 {strides = array<i32>} : memref<30x128xf32, #tpu.memory_space<vmem>>, vector<30x128xf32>,
    return
  }
}

</mosaic_0001>

<llo_original>
// kernel: tpu_custom_call.1
$region0: #{tpu_custom_call.1}
  #allocation0 [shape = 'u32[]', space=smem, size = 0x4, offset = 0x4, fixed_abs, tag = 'smem constant byte address 0x4 - core index']
  #allocation1 [shape = 'u32[144,128]{1,0:T(1,128)}', space=vmem, size = 0x12000, scoped, tag = 'internal scratch']
  %s0 = inlined_call_operand.hbm [shape: f32[30,128], index: 0, kind: input, shape index: {}, may-alias: {0,1}]
  %s1 = inlined_call_operand.hbm [shape: f32[30,128], index: 1, kind: output, shape index: {}, may-alias: {0,1}]
  %s2 = sld [smem:[#allocation0]]
  $region18: #{tpu_custom_call.1} parent=0
    _
  %s4 = ssub.s32 1, %s2
  %s5 = scalar_select 0, %s4, %s2
  $region1: #{tpu_custom_call.1} parent=0
    #allocation2 [shape = 'u8[16384]{0}', space=vmem, size = 0x4000, scoped, tag = 'input window, operand 0, single buffered']
    #allocation3 [shape = 's32[1]{0}', space=sflag, size = 0x4, scoped, tag = 'scoped memory for tpu_custom_call.1']
    #allocation4 [shape = 's32[1]{0}', space=sflag, size = 0x4, scoped, tag = 'scoped memory for tpu_custom_call.1']
    #allocation5 [shape = 'u8[16384]{0}', space=vmem, size = 0x4000, scoped, tag = 'output window, operand 0, single buffered']
    %6 = vsyncpa [#allocation3], 0
    %7 = vsyncpa [#allocation4], 0
    // Predicated region
    $region2: #{tpu_custom_call.1} parent=1 // pred_check
      _
    $region3: #{tpu_custom_call.1} parent=1 // pred_check_branch
      %9 = sbr.rel (0) target = $region5
    $region4: #{tpu_custom_call.1} parent=1 // pred_region
      %s11 = ssub.s32 512, 512
      %12 = vsyncadd [#allocation3], %s11
      %s13 = sshll.u32 [#allocation2], 4
      %s14 = int_to_ptr.vmem [resolvable:$true] %s13
      %19 = dma.hbm_to_vmem [thread:$0]  %s0, 512, %s14, [#allocation3], 128, 128, 8
    $region5: #{tpu_custom_call.1} parent=1 // pred_fallthru
      _
    // Predicated region
    $region6: #{tpu_custom_call.1} parent=1 // pred_check
      _
    $region7: #{tpu_custom_call.1} parent=1 // pred_check_branch
      %21 = sbr.rel (0) target = $region9
    $region8: #{tpu_custom_call.1} parent=1 // pred_region
      %22 = dma.done [#allocation3], 512
    $region9: #{tpu_custom_call.1} parent=1 // pred_fallthru
      _
    %v23 = vld [vmem:[#allocation2] sm:$0xff]
    %v24 = vld [vmem:[#allocation2 + $0x8] sm:$0xff]
    %v25 = vld [vmem:[#allocation2 + $0x10] sm:$0xff]
    %v26 = vld [vmem:[#allocation2 + $0x18] sm:$0x3f]
    %v27 = vxor.u32 %v23, 2147483648
    %v28 = vxor.u32 %v24, 2147483648
    %v29 = vxor.u32 %v25, 2147483648
    %v30 = vxor.u32 %v26, 2147483648
    %v31 = vmul.f32 %v27, 1.442695
    %v32 = vpow.pop %v31
    %v33 = vmul.f32 %v28, 1.442695
    %v34 = vpow.pop %v33
    %v35 = vmul.f32 %v29, 1.442695
    %v36 = vpow.pop %v35
    %v37 = vmul.f32 %v30, 1.442695
    %v38 = vpow.pop %v37
    %v39 = vadd.f32 %v32, 1.0
    %v40 = vadd.f32 %v34, 1.0
    %v41 = vadd.f32 %v36, 1.0
    %v42 = vadd.f32 %v38, 1.0
    %v43 = vrcp.pop %v39
    %v44 = vmul.f32 1.0, %v43
    %v45 = vrcp.pop %v40
    %v46 = vmul.f32 1.0, %v45
    %v47 = vrcp.pop %v41
    %v48 = vmul.f32 1.0, %v47
    %v49 = vrcp.pop %v42
    %v50 = vmul.f32 1.0, %v49
    %51 = vst [vmem:[#allocation5] sm:$0xff] %v44
    %52 = vst [vmem:[#allocation5 + $0x8] sm:$0xff] %v46
    %53 = vst [vmem:[#allocation5 + $0x10] sm:$0xff] %v48
    %54 = vst [vmem:[#allocation5 + $0x18] sm:$0x3f] %v50
    // Predicated region
    $region10: #{tpu_custom_call.1} parent=1 // pred_check
      _
    $region11: #{tpu_custom_call.1} parent=1 // pred_check_branch
      %56 = sbr.rel (0) target = $region13
    $region12: #{tpu_custom_call.1} parent=1 // pred_region
      %s58 = ssub.s32 512, 512
      %59 = vsyncadd [#allocation4], %s58
      %s60 = sshll.u32 [#allocation5], 4
      %s61 = int_to_ptr.vmem [resolvable:$true] %s60
      %66 = dma.vmem_to_hbm [thread:$0]  %s61, 512, %s1, [#allocation4], 128, 128, 8
    $region13: #{tpu_custom_call.1} parent=1 // pred_fallthru
      _
    // Predicated region
    $region14: #{tpu_custom_call.1} parent=1 // pred_check
      _
    $region15: #{tpu_custom_call.1} parent=1 // pred_check_branch
      %68 = sbr.rel (0) target = $region17
    $region16: #{tpu_custom_call.1} parent=1 // pred_region
      %69 = dma.done [#allocation4], 512
    $region17: #{tpu_custom_call.1} parent=1 // pred_fallthru
      _
    %70 = vsyncpa [#allocation3], 1
    %71 = vsyncpa [#allocation4], 1

</llo_original>
